<compile_context>
chip_gen: v7x
topology: tpu7x:2x2x1
jax: 0.10.0
libtpu: 0.0.40
codegen_flags: <defaults>
</compile_context>

<pallas_src>
import functools
import math

import jax
import jax.numpy as jnp
from jax import lax
from jax.experimental import pallas as pl
from jax.experimental.pallas import tpu as pltpu


def _round_up(x: int, m: int) -> int:
    return (x + m - 1) // m * m


def _ffn_kernel(x_ref, w1_ref, w2_ref, p_ref, o_ref, *, d_real, dp, hp, approx_gelu):
    x = x_ref[...]                                    # (tm, Dp) f32; padded cols are 0

    # Packed small params: row 0 = b1, rows 1..3 = b2 / gamma / beta.
    b1 = p_ref[0:1, :hp]                              # (1, Hp)
    b2 = p_ref[1:2, :dp]                              # (1, Dp)
    gamma = p_ref[2:3, :dp]                           # (1, Dp)
    beta = p_ref[3:4, :dp]                            # (1, Dp)

    w_dtype = w1_ref.dtype                            # weights pre-cast in the wrapper

    # --- Linear(dim -> hidden) on the MXU, f32 accumulation ---
    h = jnp.dot(x.astype(w_dtype), w1_ref[...],
                preferred_element_type=jnp.float32) + b1

    if approx_gelu:
        # tanh approximation -> EUP slot (numerics differ slightly from torch exact GELU).
        h = jax.nn.gelu(h, approximate=True)
    else:
        # exact GELU, matches torch.nn.GELU(approximate='none').
        h = 0.5 * h * (1.0 + lax.erf(h * 0.7071067811865476))

    # --- Linear(hidden -> dim) on the MXU, f32 accumulation ---
    y = jnp.dot(h.astype(w_dtype), w2_ref[...],
                preferred_element_type=jnp.float32) + b2

    # --- residual add (padded D columns stay exactly zero) ---
    z = x + y

    # --- LayerNorm over the real D features (eps=1e-5, biased variance) ---
    # No lane mask needed: padded z lanes are zero, so their only contribution to
    # sum((z-mean)^2) is (Dp-D)*mean^2, removed in closed form.
    inv_d = 1.0 / float(d_real)
    mean = jnp.sum(z, axis=-1, keepdims=True) * inv_d
    centered = z - mean
    ssq = jnp.sum(centered * centered, axis=-1, keepdims=True)
    if dp != d_real:
        ssq = ssq - float(dp - d_real) * (mean * mean)
    zn = centered * lax.rsqrt(ssq * inv_d + 1e-5)
    o_ref[...] = (zn * gamma + beta).astype(o_ref.dtype)


def prepare_ffn_params(w1, b1, w2, b2, gamma, beta, *, weight_dtype=jnp.bfloat16):
    """One-time padding / packing of the FeedForward parameters.

    Weights are stored (in, out) so the kernel computes x @ W.  Do this once at
    model init (hoisted out of the per-call path); only activations are padded
    per call.  bf16 weight storage halves HBM/VMEM traffic; f32 accumulation is
    kept inside the kernel.
    """
    f32 = jnp.float32
    D, H = w1.shape
    Dp, Hp = _round_up(D, 128), _round_up(H, 128)
    P = max(Dp, Hp)
    w1p = jnp.pad(jnp.asarray(w1, weight_dtype), ((0, Dp - D), (0, Hp - H)))
    w2p = jnp.pad(jnp.asarray(w2, weight_dtype), ((0, Hp - H), (0, Dp - D)))
    small = jnp.zeros((4, P), f32)
    small = small.at[0, :H].set(jnp.asarray(b1, f32))
    small = small.at[1, :D].set(jnp.asarray(b2, f32))
    small = small.at[2, :D].set(jnp.asarray(gamma, f32))
    small = small.at[3, :D].set(jnp.asarray(beta, f32))
    return dict(w1=w1p, w2=w2p, small=small, d=D, h=H, dp=Dp, hp=Hp, p=P)


def feed_forward(x, prepared, *, tm=512, approx_gelu=False):
    """x: (B, S, D) float32; `prepared` from prepare_ffn_params."""
    B, S, D = x.shape
    assert D == prepared["d"], "x feature dim does not match prepared params"
    M = B * S
    Dp, Hp, P = prepared["dp"], prepared["hp"], prepared["p"]
    w1p, w2p, small = prepared["w1"], prepared["w2"], prepared["small"]
    wbytes = jnp.dtype(w1p.dtype).itemsize

    # Large row tile (mem-bound roofline likes 256-512) but capped at ceil(M/2) so
    # the "parallel" grid axis has >= 2 steps -> both v7x TensorCores get work.
    tm_eff = max(8, min(tm, _round_up(pl.cdiv(M, 2), 8)))
    Mp = _round_up(M, tm_eff)
    grid = (Mp // tm_eff,)

    x2d = x.reshape(M, D)
    needs_pad = (Mp != M) or (Dp != D)
    if needs_pad:
        x2d = jnp.pad(x2d, ((0, Mp - M), (0, Dp - D)))

    kernel = functools.partial(
        _ffn_kernel, d_real=D, dp=Dp, hp=Hp, approx_gelu=approx_gelu)

    cost = pl.CostEstimate(
        flops=4 * Mp * Dp * Hp,                       # two matmuls, 2*M*K*N each
        transcendentals=Mp * Hp,                      # one erf/tanh per hidden element
        bytes_accessed=4 * 2 * Mp * Dp + wbytes * 2 * Dp * Hp + 4 * 4 * P,
    )

    def run(single_buffer_weights):
        wmode = pl.Buffered(1) if single_buffer_weights else None
        n_wbuf = 1 if single_buffer_weights else 2

        def wspec(shape):
            if wmode is None:
                return pl.BlockSpec(shape, lambda i: (0, 0))
            return pl.BlockSpec(shape, lambda i: (0, 0), pipeline_mode=wmode)

        vmem_bytes = (
            2 * tm_eff * Dp * 4                       # x tiles (double-buffered)
            + 2 * tm_eff * Dp * 4                     # out tiles (double-buffered)
            + n_wbuf * 2 * Dp * Hp * wbytes           # resident W1 + W2
            + n_wbuf * 4 * P * 4                      # packed b1/b2/gamma/beta
            + 4 * tm_eff * Hp * 4                     # hidden-activation temporaries
        )
        vmem_limit = int(min(max(vmem_bytes + (8 << 20), 16 << 20), 100 << 20))

        return pl.pallas_call(
            kernel,
            out_shape=jax.ShapeDtypeStruct((Mp, Dp), x.dtype),
            grid_spec=pltpu.PrefetchScalarGridSpec(
                num_scalar_prefetch=0,
                grid=grid,
                in_specs=[
                    pl.BlockSpec((tm_eff, Dp), lambda i: (i, 0)),   # x row tile
                    wspec((Dp, Hp)),                                # W1 (resident)
                    wspec((Hp, Dp)),                                # W2 (resident)
                    wspec((4, P)),                                  # packed small params
                ],
                out_specs=pl.BlockSpec((tm_eff, Dp), lambda i: (i, 0)),
            ),
            compiler_params=pltpu.CompilerParams(
                dimension_semantics=("parallel",),
                vmem_limit_bytes=vmem_limit),
            cost_estimate=cost,
        )(x2d, w1p, w2p, small)

    try:
        out = run(True)
    except Exception:  # pragma: no cover - jax builds that reject Buffered(1)
        out = run(False)

    if needs_pad:
        out = out[:M, :D]
    return out.reshape(B, S, D)


def feed_forward_ref(x, w1, b1, w2, b2, gamma, beta):
    """Plain-JAX reference (same math) for a correctness check."""
    h = jnp.dot(x, w1) + b1
    h = 0.5 * h * (1.0 + lax.erf(h / jnp.sqrt(2.0)))
    y = jnp.dot(h, w2) + b2
    z = x + y
    mean = jnp.mean(z, axis=-1, keepdims=True)
    var = jnp.mean((z - mean) ** 2, axis=-1, keepdims=True)
    zn = (z - mean) * lax.rsqrt(var + 1e-5)
    return zn * gamma + beta


if __name__ == "__main__":
    # Small shapes consistent with the module: batch=2, seq=8, dim=32
    # hidden_dim = int(32 * 1.3) = 41
    B, S, D = 2, 8, 32
    H = int(D * 1.3)

    key = jax.random.PRNGKey(0)
    k_x, k_w1, k_b1, k_w2, k_b2 = jax.random.split(key, 5)

    x = jax.random.normal(k_x, (B, S, D), dtype=jnp.float32)

    # Deterministic parameter init (weights stored (in, out) for x @ W).
    w1 = jax.random.normal(k_w1, (D, H), dtype=jnp.float32) * (1.0 / math.sqrt(D))
    b1 = jax.random.normal(k_b1, (H,), dtype=jnp.float32) * 0.02
    w2 = jax.random.normal(k_w2, (H, D), dtype=jnp.float32) * (1.0 / math.sqrt(H))
    b2 = jax.random.normal(k_b2, (D,), dtype=jnp.float32) * 0.02
    gamma = jnp.ones((D,), dtype=jnp.float32)
    beta = jnp.zeros((D,), dtype=jnp.float32)

    ref = feed_forward_ref(x, w1, b1, w2, b2, gamma, beta)

    # f32-weight path: matches the torch f32 / exact-GELU reference tightly.
    params_f32 = prepare_ffn_params(w1, b1, w2, b2, gamma, beta,
                                    weight_dtype=jnp.float32)
    out_f32 = jax.block_until_ready(feed_forward(x, params_f32))
    assert out_f32.shape == (B, S, D)
    assert jnp.allclose(out_f32, ref, atol=1e-4, rtol=1e-4), "f32 path mismatch vs reference"

    # Default bf16-weight path (native MXU rate on v5e/v6e, f32 accumulation).
    params_bf16 = prepare_ffn_params(w1, b1, w2, b2, gamma, beta)
    out_bf16 = jax.block_until_ready(feed_forward(x, params_bf16))
    assert out_bf16.shape == (B, S, D)
    assert jnp.allclose(out_bf16, ref, atol=5e-2, rtol=5e-2), "bf16 path mismatch vs reference"

    print("KERNEL_OK")
</pallas_src>

<mosaic_0001>
module attributes {stable_mosaic.version = 11 : i64} {
  func.func @_ffn_kernel(%arg0: i32, %arg1: memref<8x128xf32, #tpu.memory_space<vmem>>, %arg2: memref<128x128xf32, #tpu.memory_space<vmem>>, %arg3: memref<128x128xf32, #tpu.memory_space<vmem>>, %arg4: memref<4x128xf32, #tpu.memory_space<vmem>>, %arg5: memref<8x128xf32, #tpu.memory_space<vmem>>) attributes {dimension_semantics = [#tpu.dimension_semantics<parallel>], iteration_bounds = array<i64: 2>, scalar_prefetch = 0 : i64, scratch_operands = 0 : i64, tpu.core_type = #tpu.core_type<tc>, window_params = [{transform_indices = @transform_0, window_bounds = array<i64: 8, 128>}, {pipeline_mode = #tpu.pipeline_mode<synchronous>, transform_indices = @transform_1, window_bounds = array<i64: 128, 128>}, {pipeline_mode = #tpu.pipeline_mode<synchronous>, transform_indices = @transform_2, window_bounds = array<i64: 128, 128>}, {pipeline_mode = #tpu.pipeline_mode<synchronous>, transform_indices = @transform_3, window_bounds = array<i64: 4, 128>}, {transform_indices = @transform_4, window_bounds = array<i64: 8, 128>}]} {
    %c0 = arith.constant 0 : index
    %c0_0 = arith.constant 0 : index
    %0 = vector.load %arg1[%c0, %c0_0] : memref<8x128xf32, #tpu.memory_space<vmem>>, vector<8x128xf32>
    %c0_1 = arith.constant 0 : index
    %c0_2 = arith.constant 0 : index
    %1 = vector.load %arg4[%c0_1, %c0_2] : memref<4x128xf32, #tpu.memory_space<vmem>>, vector<1x128xf32>
    %c1 = arith.constant 1 : index
    %c0_3 = arith.constant 0 : index
    %2 = vector.load %arg4[%c1, %c0_3] : memref<4x128xf32, #tpu.memory_space<vmem>>, vector<1x128xf32>
    %c2 = arith.constant 2 : index
    %c0_4 = arith.constant 0 : index
    %3 = vector.load %arg4[%c2, %c0_4] : memref<4x128xf32, #tpu.memory_space<vmem>>, vector<1x128xf32>
    %c3 = arith.constant 3 : index
    %c0_5 = arith.constant 0 : index
    %4 = vector.load %arg4[%c3, %c0_5] : memref<4x128xf32, #tpu.memory_space<vmem>>, vector<1x128xf32>
    %c0_6 = arith.constant 0 : index
    %c0_7 = arith.constant 0 : index
    %5 = vector.load %arg2[%c0_6, %c0_7] : memref<128x128xf32, #tpu.memory_space<vmem>>, vector<128x128xf32>
    %cst = arith.constant dense<0.000000e+00> : vector<8x128xf32>
    %6 = tpu.matmul %0, %5, %cst {dimension_numbers = #tpu.dot_dimension_numbers<[1], [0], [0], [1], [0, 0, 1, 1], [], []>} : vector<8x128xf32>, vector<128x128xf32>, vector<8x128xf32> -> vector<8x128xf32>
    %7 = vector.broadcast %1 : vector<1x128xf32> to vector<8x128xf32>
    %8 = arith.addf %6, %7 : vector<8x128xf32>
    %cst_8 = arith.constant 5.000000e-01 : f32
    %9 = vector.broadcast %cst_8 : f32 to vector<8x128xf32>
    %10 = arith.mulf %9, %8 : vector<8x128xf32>
    %cst_9 = arith.constant 0.707106769 : f32
    %11 = vector.broadcast %cst_9 : f32 to vector<8x128xf32>
    %12 = arith.mulf %8, %11 : vector<8x128xf32>
    %13 = math.erf %12 : vector<8x128xf32>
    %cst_10 = arith.constant 1.000000e+00 : f32
    %14 = vector.broadcast %cst_10 : f32 to vector<8x128xf32>
    %15 = arith.addf %14, %13 : vector<8x128xf32>
    %16 = arith.mulf %10, %15 : vector<8x128xf32>
    %c0_11 = arith.constant 0 : index
    %c0_12 = arith.constant 0 : index
    %17 = vector.load %arg3[%c0_11, %c0_12] : memref<128x128xf32, #tpu.memory_space<vmem>>, vector<128x128xf32>
    %cst_13 = arith.constant dense<0.000000e+00> : vector<8x128xf32>
    %18 = tpu.matmul %16, %17, %cst_13 {dimension_numbers = #tpu.dot_dimension_numbers<[1], [0], [0], [1], [0, 0, 1, 1], [], []>} : vector<8x128xf32>, vector<128x128xf32>, vector<8x128xf32> -> vector<8x128xf32>
    %19 = vector.broadcast %2 : vector<1x128xf32> to vector<8x128xf32>
    %20 = arith.addf %18, %19 : vector<8x128xf32>
    %21 = arith.addf %0, %20 : vector<8x128xf32>
    %cst_14 = arith.constant dense<0.000000e+00> : vector<8xf32>
    %22 = vector.multi_reduction <add>, %21, %cst_14 [1] : vector<8x128xf32> to vector<8xf32>
    %23 = vector.shape_cast %22 : vector<8xf32> to vector<8x1xf32>
    %cst_15 = arith.constant 3.125000e-02 : f32
    %24 = vector.broadcast %cst_15 : f32 to vector<8x1xf32>
    %25 = arith.mulf %23, %24 : vector<8x1xf32>
    %26 = vector.broadcast %25 : vector<8x1xf32> to vector<8x128xf32>
    %27 = arith.subf %21, %26 : vector<8x128xf32>
    %28 = arith.mulf %27, %27 : vector<8x128xf32>
    %cst_16 = arith.constant dense<0.000000e+00> : vector<8xf32>
    %29 = vector.multi_reduction <add>, %28, %cst_16 [1] : vector<8x128xf32> to vector<8xf32>
    %30 = vector.shape_cast %29 : vector<8xf32> to vector<8x1xf32>
    %31 = arith.mulf %25, %25 : vector<8x1xf32>
    %cst_17 = arith.constant 9.600000e+01 : f32
    %32 = vector.broadcast %cst_17 : f32 to vector<8x1xf32>
    %33 = arith.mulf %32, %31 : vector<8x1xf32>
    %34 = arith.subf %30, %33 : vector<8x1xf32>
    %cst_18 = arith.constant 3.125000e-02 : f32
    %35 = vector.broadcast %cst_18 : f32 to vector<8x1xf32>
    %36 = arith.mulf %34, %35 : vector<8x1xf32>
    %cst_19 = arith.constant 9.99999974E-6 : f32
    %37 = vector.broadcast %cst_19 : f32 to vector<8x1xf32>
    %38 = arith.addf %36, %37 : vector<8x1xf32>
    %39 = math.rsqrt %38 : vector<8x1xf32>
    %40 = vector.broadcast %39 : vector<8x1xf32> to vector<8x128xf32>
    %41 = arith.mulf %27, %40 : vector<8x128xf32>
    %42 = vector.broadcast %3 : vector<1x128xf32> to vector<8x128xf32>
    %43 = arith.mulf %41, %42 : vector<8x128xf32>
    %44 = vector.broadcast %4 : vector<1x128xf32> to vector<8x128xf32>
    %45 = arith.addf %43, %44 : vector<8x128xf32>
    %c0_20 = arith.constant 0 : index
    %c0_21 = arith.constant 0 : index
    %46 = vector.load %arg5[%c0_20, %c0_21] : memref<8x128xf32, #tpu.memory_space<vmem>>, vector<8x128xf32>
    tpu.vector_store %arg5[%c0_20, %c0_21], %45 {strides = array<i32>} : memref<8x128xf32, #tpu.memory_space<vmem>>, vector<8x128xf32>,
    return
  }
  func.func @transform_0(%arg0: i32) -> (i32, i32) {
    %c0_i32 = arith.constant 0 : i32
    %c0_i32_0 = arith.constant 0 : i32
    return %arg0, %c0_i32 : i32, i32
  }
  func.func @transform_1(%arg0: i32) -> (i32, i32) {
    %c0_i32 = arith.constant 0 : i32
    %c0_i32_0 = arith.constant 0 : i32
    %c0_i32_1 = arith.constant 0 : i32
    return %c0_i32, %c0_i32_0 : i32, i32
  }
  func.func @transform_2(%arg0: i32) -> (i32, i32) {
    %c0_i32 = arith.constant 0 : i32
    %c0_i32_0 = arith.constant 0 : i32
    %c0_i32_1 = arith.constant 0 : i32
    return %c0_i32, %c0_i32_0 : i32, i32
  }
  func.func @transform_3(%arg0: i32) -> (i32, i32) {
    %c0_i32 = arith.constant 0 : i32
    %c0_i32_0 = arith.constant 0 : i32
    %c0_i32_1 = arith.constant 0 : i32
    return %c0_i32, %c0_i32_0 : i32, i32
  }
  func.func @transform_4(%arg0: i32) -> (i32, i32) {
    %c0_i32 = arith.constant 0 : i32
    %c0_i32_0 = arith.constant 0 : i32
    return %arg0, %c0_i32 : i32, i32
  }
}

module attributes {stable_mosaic.version = 11 : i64} {
  func.func @_ffn_kernel(%arg0: i32, %arg1: memref<8x128xf32, #tpu.memory_space<vmem>>, %arg2: memref<128x128xf32, #tpu.memory_space<vmem>>, %arg3: memref<128x128xf32, #tpu.memory_space<vmem>>, %arg4: memref<4x128xf32, #tpu.memory_space<vmem>>, %arg5: memref<8x128xf32, #tpu.memory_space<vmem>>) attributes {dimension_semantics = [#tpu.dimension_semantics<parallel>], iteration_bounds = array<i64: 2>, scalar_prefetch = 0 : i64, scratch_operands = 0 : i64, tpu.core_type = #tpu.core_type<tc>, window_params = [{transform_indices = @transform_0, window_bounds = array<i64: 8, 128>}, {pipeline_mode = #tpu.pipeline_mode<synchronous>, transform_indices = @transform_1, window_bounds = array<i64: 128, 128>}, {pipeline_mode = #tpu.pipeline_mode<synchronous>, transform_indices = @transform_2, window_bounds = array<i64: 128, 128>}, {pipeline_mode = #tpu.pipeline_mode<synchronous>, transform_indices = @transform_3, window_bounds = array<i64: 4, 128>}, {transform_indices = @transform_4, window_bounds = array<i64: 8, 128>}]} {
    %c0 = arith.constant 0 : index
    %c0_0 = arith.constant 0 : index
    %0 = vector.load %arg1[%c0, %c0_0] : memref<8x128xf32, #tpu.memory_space<vmem>>, vector<8x128xf32>
    %c0_1 = arith.constant 0 : index
    %c0_2 = arith.constant 0 : index
    %1 = vector.load %arg4[%c0_1, %c0_2] : memref<4x128xf32, #tpu.memory_space<vmem>>, vector<1x128xf32>
    %c1 = arith.constant 1 : index
    %c0_3 = arith.constant 0 : index
    %2 = vector.load %arg4[%c1, %c0_3] : memref<4x128xf32, #tpu.memory_space<vmem>>, vector<1x128xf32>
    %c2 = arith.constant 2 : index
    %c0_4 = arith.constant 0 : index
    %3 = vector.load %arg4[%c2, %c0_4] : memref<4x128xf32, #tpu.memory_space<vmem>>, vector<1x128xf32>
    %c3 = arith.constant 3 : index
    %c0_5 = arith.constant 0 : index
    %4 = vector.load %arg4[%c3, %c0_5] : memref<4x128xf32, #tpu.memory_space<vmem>>, vector<1x128xf32>
    %c0_6 = arith.constant 0 : index
    %c0_7 = arith.constant 0 : index
    %5 = vector.load %arg2[%c0_6, %c0_7] : memref<128x128xf32, #tpu.memory_space<vmem>>, vector<128x128xf32>
    %cst = arith.constant dense<0.000000e+00> : vector<8x128xf32>
    %6 = tpu.matmul %0, %5, %cst {dimension_numbers = #tpu.dot_dimension_numbers<[1], [0], [0], [1], [0, 0, 1, 1], [], []>} : vector<8x128xf32>, vector<128x128xf32>, vector<8x128xf32> -> vector<8x128xf32>
    %7 = vector.broadcast %1 : vector<1x128xf32> to vector<8x128xf32>
    %8 = arith.addf %6, %7 : vector<8x128xf32>
    %cst_8 = arith.constant 5.000000e-01 : f32
    %9 = vector.broadcast %cst_8 : f32 to vector<8x128xf32>
    %10 = arith.mulf %9, %8 : vector<8x128xf32>
    %cst_9 = arith.constant 0.707106769 : f32
    %11 = vector.broadcast %cst_9 : f32 to vector<8x128xf32>
    %12 = arith.mulf %8, %11 : vector<8x128xf32>
    %13 = math.erf %12 : vector<8x128xf32>
    %cst_10 = arith.constant 1.000000e+00 : f32
    %14 = vector.broadcast %cst_10 : f32 to vector<8x128xf32>
    %15 = arith.addf %14, %13 : vector<8x128xf32>
    %16 = arith.mulf %10, %15 : vector<8x128xf32>
    %c0_11 = arith.constant 0 : index
    %c0_12 = arith.constant 0 : index
    %17 = vector.load %arg3[%c0_11, %c0_12] : memref<128x128xf32, #tpu.memory_space<vmem>>, vector<128x128xf32>
    %cst_13 = arith.constant dense<0.000000e+00> : vector<8x128xf32>
    %18 = tpu.matmul %16, %17, %cst_13 {dimension_numbers = #tpu.dot_dimension_numbers<[1], [0], [0], [1], [0, 0, 1, 1], [], []>} : vector<8x128xf32>, vector<128x128xf32>, vector<8x128xf32> -> vector<8x128xf32>
    %19 = vector.broadcast %2 : vector<1x128xf32> to vector<8x128xf32>
    %20 = arith.addf %18, %19 : vector<8x128xf32>
    %21 = arith.addf %0, %20 : vector<8x128xf32>
    %cst_14 = arith.constant dense<0.000000e+00> : vector<8xf32>
    %22 = vector.multi_reduction <add>, %21, %cst_14 [1] : vector<8x128xf32> to vector<8xf32>
    %23 = vector.shape_cast %22 : vector<8xf32> to vector<8x1xf32>
    %cst_15 = arith.constant 3.125000e-02 : f32
    %24 = vector.broadcast %cst_15 : f32 to vector<8x1xf32>
    %25 = arith.mulf %23, %24 : vector<8x1xf32>
    %26 = vector.broadcast %25 : vector<8x1xf32> to vector<8x128xf32>
    %27 = arith.subf %21, %26 : vector<8x128xf32>
    %28 = arith.mulf %27, %27 : vector<8x128xf32>
    %cst_16 = arith.constant dense<0.000000e+00> : vector<8xf32>
    %29 = vector.multi_reduction <add>, %28, %cst_16 [1] : vector<8x128xf32> to vector<8xf32>
    %30 = vector.shape_cast %29 : vector<8xf32> to vector<8x1xf32>
    %31 = arith.mulf %25, %25 : vector<8x1xf32>
    %cst_17 = arith.constant 9.600000e+01 : f32
    %32 = vector.broadcast %cst_17 : f32 to vector<8x1xf32>
    %33 = arith.mulf %32, %31 : vector<8x1xf32>
    %34 = arith.subf %30, %33 : vector<8x1xf32>
    %cst_18 = arith.constant 3.125000e-02 : f32
    %35 = vector.broadcast %cst_18 : f32 to vector<8x1xf32>
    %36 = arith.mulf %34, %35 : vector<8x1xf32>
    %cst_19 = arith.constant 9.99999974E-6 : f32
    %37 = vector.broadcast %cst_19 : f32 to vector<8x1xf32>
    %38 = arith.addf %36, %37 : vector<8x1xf32>
    %39 = math.rsqrt %38 : vector<8x1xf32>
    %40 = vector.broadcast %39 : vector<8x1xf32> to vector<8x128xf32>
    %41 = arith.mulf %27, %40 : vector<8x128xf32>
    %42 = vector.broadcast %3 : vector<1x128xf32> to vector<8x128xf32>
    %43 = arith.mulf %41, %42 : vector<8x128xf32>
    %44 = vector.broadcast %4 : vector<1x128xf32> to vector<8x128xf32>
    %45 = arith.addf %43, %44 : vector<8x128xf32>
    %c0_20 = arith.constant 0 : index
    %c0_21 = arith.constant 0 : index
    %46 = vector.load %arg5[%c0_20, %c0_21] : memref<8x128xf32, #tpu.memory_space<vmem>>, vector<8x128xf32>
    tpu.vector_store %arg5[%c0_20, %c0_21], %45 {strides = array<i32>} : memref<8x128xf32, #tpu.memory_space<vmem>>, vector<8x128xf32>,
    return
  }
  func.func @transform_0(%arg0: i32) -> (i32, i32) {
    %c0_i32 = arith.constant 0 : i32
    %c0_i32_0 = arith.constant 0 : i32
    return %arg0, %c0_i32 : i32, i32
  }
  func.func @transform_1(%arg0: i32) -> (i32, i32) {
    %c0_i32 = arith.constant 0 : i32
    %c0_i32_0 = arith.constant 0 : i32
    %c0_i32_1 = arith.constant 0 : i32
    return %c0_i32, %c0_i32_0 : i32, i32
  }
  func.func @transform_2(%arg0: i32) -> (i32, i32) {
    %c0_i32 = arith.constant 0 : i32
    %c0_i32_0 = arith.constant 0 : i32
    %c0_i32_1 = arith.constant 0 : i32
    return %c0_i32, %c0_i32_0 : i32, i32
  }
  func.func @transform_3(%arg0: i32) -> (i32, i32) {
    %c0_i32 = arith.constant 0 : i32
    %c0_i32_0 = arith.constant 0 : i32
    %c0_i32_1 = arith.constant 0 : i32
    return %c0_i32, %c0_i32_0 : i32, i32
  }
  func.func @transform_4(%arg0: i32) -> (i32, i32) {
    %c0_i32 = arith.constant 0 : i32
    %c0_i32_0 = arith.constant 0 : i32
    return %arg0, %c0_i32 : i32, i32
  }
}

</mosaic_0001>

<llo_original>
// kernel: tpu_custom_call.1
$region0: #{tpu_custom_call.1}
  #allocation0 [shape = 'u32[]', space=smem, size = 0x4, offset = 0x4, fixed_abs, tag = 'smem constant byte address 0x4 - core index']
  #allocation1 [shape = 'u32[144,128]{1,0:T(1,128)}', space=vmem, size = 0x12000, scoped, tag = 'internal scratch']
  %s0 = inlined_call_operand.hbm [shape: f32[16,128], index: 0, kind: input, shape index: {}]
  %s1 = inlined_call_operand.hbm [shape: f32[128,128], index: 1, kind: input, shape index: {}]
  %s2 = inlined_call_operand.hbm [shape: f32[128,128], index: 2, kind: input, shape index: {}]
  %s3 = inlined_call_operand.vmem [shape: f32[4,128], index: 3, kind: input, shape index: {}]
  %s4 = inlined_call_operand.hbm [shape: f32[16,128], index: 4, kind: output, shape index: {}]
  %s5 = sld [smem:[#allocation0]]
  $region61: #{tpu_custom_call.1} parent=0
    _
  %s7 = ssub.s32 1, %s5
  %s8 = scalar_select 0, %s7, %s5
  $region1: #{tpu_custom_call.1} parent=0
    #allocation2 [shape = 'u8[8192]{0}', space=vmem, size = 0x2000, scoped, tag = 'input window, operand 0']
    #allocation3 [shape = 's32[2]{0}', space=sflag, size = 0x8, scoped, tag = 'scoped memory for tpu_custom_call.1']
    #allocation4 [shape = 's32[2]{0}', space=sflag, size = 0x8, scoped, tag = 'scoped memory for tpu_custom_call.1']
    #allocation5 [shape = 'u8[65536]{0}', space=vmem, size = 0x10000, scoped, tag = 'input window, operand 1, single buffered']
    #allocation6 [shape = 's32[1]{0}', space=sflag, size = 0x4, scoped, tag = 'scoped memory for tpu_custom_call.1']
    #allocation7 [shape = 'u8[65536]{0}', space=vmem, size = 0x10000, scoped, tag = 'input window, operand 2, single buffered']
    #allocation8 [shape = 'u8[8192]{0}', space=vmem, size = 0x2000, scoped, tag = 'output window, operand 0']
    %9 = vsyncpa [#allocation3], 0
    %s10 = scalar_lea.sflag [#allocation3], 1
    %11 = vsyncpa %s10, 0
    %12 = vsyncpa [#allocation6], 0
    %13 = vsyncpa [#allocation4], 0
    %s14 = scalar_lea.sflag [#allocation4], 1
    %15 = vsyncpa %s14, 0
    loop: start=0, step=1, limit=4
    $region2: #{tpu_custom_call.1} parent=1 // loop_pre_header
      _
    $region3: #{tpu_custom_call.1} parent=1 // loop_header
      %s17 = sphi 0, %s21
      %p18 = scmp.ge.s32.totalorder %s17, 4
      %s27 = sphi 0, %s29
      %s30 = sphi 0, %s27
      %s31 = sphi 0, %s30
      %s47 = sphi 0, %s31
      %s51 = sphi 0, %s51
      %s53 = sphi 0, %s51
      %s54 = sphi 0, %s53
      %s68 = sphi 0, %s54
      %s72 = sphi 0, %s72
      %s74 = sphi 0, %s72
      %s75 = sphi 0, %s74
      %s89 = sphi 0, %s75
      %s93 = sphi 0, %s93
      %s95 = sphi 0, %s93
      %s96 = sphi 0, %s95
      %s110 = sphi 0, %s96
      %s116 = sphi 0, %s118
      %s119 = sphi 0, %s116
      %s120 = sphi 0, %s119
      %s136 = sphi 0, %s120
    $region4: #{tpu_custom_call.1} parent=1 // loop_header_branch
      %20 = sbr.rel (%p18) target = $region8
    $region5: #{tpu_custom_call.1} parent=1 // loop_body
      %s22 = ssub.s32 %s17, 1
      %s23 = ssub.s32 %s17, 2
      %s24 = sadd.s32 %s17, 1
      %s25 = ssub.s32 %s17, %s24
      %p26 = scmp.eq.s32.totalorder %s25, 0
      %s28 = sadd.s32 %s27, 1
      %s29 = scalar_select %p26, %s27, %s28
      %p32 = pneg %p26
      %p33 = scmp.eq.s32.totalorder %s17, 1
      %p34 = por %p32, %p33
      %p35 = scmp.ne.s32.totalorder %s27, %s30
      %p36 = scmp.eq.s32.totalorder %s17, 0
      %p37 = por %p35, %p36
      %p38 = scmp.ne.s32.totalorder %s27, %s30
      %p39 = scmp.eq.s32.totalorder %s22, 1
      %p40 = por %p38, %p39
      %p41 = scmp.ne.s32.totalorder %s30, %s31
      %p42 = scmp.eq.s32.totalorder %s22, 0
      %p43 = por %p41, %p42
      %p44 = scmp.ne.s32.totalorder %s30, %s31
      %p45 = scmp.eq.s32.totalorder %s23, 1
      %p46 = por %p44, %p45
      %p48 = scmp.ne.s32.totalorder %s31, %s47
      %p49 = scmp.eq.s32.totalorder %s23, 0
      %p50 = por %p48, %p49
      %s52 = sadd.s32 %s51, 1
      %p55 = scmp.eq.s32.totalorder %s17, 1
      %p56 = scmp.ne.s32.totalorder %s51, %s53
      %p57 = scmp.eq.s32.totalorder %s17, 0
      %p58 = por %p56, %p57
      %p59 = scmp.ne.s32.totalorder %s51, %s53
      %p60 = scmp.eq.s32.totalorder %s22, 1
      %p61 = por %p59, %p60
      %p62 = scmp.ne.s32.totalorder %s53, %s54
      %p63 = scmp.eq.s32.totalorder %s22, 0
      %p64 = por %p62, %p63
      %p65 = scmp.ne.s32.totalorder %s53, %s54
      %p66 = scmp.eq.s32.totalorder %s23, 1
      %p67 = por %p65, %p66
      %p69 = scmp.ne.s32.totalorder %s54, %s68
      %p70 = scmp.eq.s32.totalorder %s23, 0
      %p71 = por %p69, %p70
      %s73 = sadd.s32 %s72, 1
      %p76 = scmp.eq.s32.totalorder %s17, 1
      %p77 = scmp.ne.s32.totalorder %s72, %s74
      %p78 = scmp.eq.s32.totalorder %s17, 0
      %p79 = por %p77, %p78
      %p80 = scmp.ne.s32.totalorder %s72, %s74
      %p81 = scmp.eq.s32.totalorder %s22, 1
      %p82 = por %p80, %p81
      %p83 = scmp.ne.s32.totalorder %s74, %s75
      %p84 = scmp.eq.s32.totalorder %s22, 0
      %p85 = por %p83, %p84
      %p86 = scmp.ne.s32.totalorder %s74, %s75
      %p87 = scmp.eq.s32.totalorder %s23, 1
      %p88 = por %p86, %p87
      %p90 = scmp.ne.s32.totalorder %s75, %s89
      %p91 = scmp.eq.s32.totalorder %s23, 0
      %p92 = por %p90, %p91
      %s94 = sadd.s32 %s93, 1
      %p97 = scmp.eq.s32.totalorder %s17, 1
      %p98 = scmp.ne.s32.totalorder %s93, %s95
      %p99 = scmp.eq.s32.totalorder %s17, 0
      %p100 = por %p98, %p99
      %p101 = scmp.ne.s32.totalorder %s93, %s95
      %p102 = scmp.eq.s32.totalorder %s22, 1
      %p103 = por %p101, %p102
      %p104 = scmp.ne.s32.totalorder %s95, %s96
      %p105 = scmp.eq.s32.totalorder %s22, 0
      %p106 = por %p104, %p105
      %p107 = scmp.ne.s32.totalorder %s95, %s96
      %p108 = scmp.eq.s32.totalorder %s23, 1
      %p109 = por %p107, %p108
      %p111 = scmp.ne.s32.totalorder %s96, %s110
      %p112 = scmp.eq.s32.totalorder %s23, 0
      %p113 = por %p111, %p112
      %s114 = ssub.s32 %s17, %s24
      %p115 = scmp.eq.s32.totalorder %s114, 0
      %s117 = sadd.s32 %s116, 1
      %s118 = scalar_select %p115, %s116, %s117
      %p121 = pneg %p115
      %p122 = scmp.eq.s32.totalorder %s17, 1
      %p123 = por %p121, %p122
      %p124 = scmp.ne.s32.totalorder %s116, %s119
      %p125 = scmp.eq.s32.totalorder %s17, 0
      %p126 = por %p124, %p125
      %p127 = scmp.ne.s32.totalorder %s116, %s119
      %p128 = scmp.eq.s32.totalorder %s22, 1
      %p129 = por %p127, %p128
      %p130 = scmp.ne.s32.totalorder %s119, %s120
      %p131 = scmp.eq.s32.totalorder %s22, 0
      %p132 = por %p130, %p131
      %p133 = scmp.ne.s32.totalorder %s119, %s120
      %p134 = scmp.eq.s32.totalorder %s23, 1
      %p135 = por %p133, %p134
      %p137 = scmp.ne.s32.totalorder %s120, %s136
      %p138 = scmp.eq.s32.totalorder %s23, 0
      %p139 = por %p137, %p138
      %p140 = scmp.le.s32.totalorder 1, %s17
      %p141 = scmp.lt.s32.totalorder %s17, 3
      %p142 = pnand %p140, %p141
      %p143 = pneg %p142
      // Predicated region
      $region9: #{tpu_custom_call.1} parent=5 // pred_check
        _
      $region10: #{tpu_custom_call.1} parent=5 // pred_check_branch
        %145 = sbr.rel (%p142) target = $region12
      $region11: #{tpu_custom_call.1} parent=5 // pred_region
        %s146 = ssub.s32 %s17, 1
        // Predicated region
        $region13: #{tpu_custom_call.1} parent=11 // pred_check
          %p147 = pneg %p64
        $region14: #{tpu_custom_call.1} parent=11 // pred_check_branch
          %149 = sbr.rel (%p147) target = $region16
        $region15: #{tpu_custom_call.1} parent=11 // pred_region
          %s151 = ssub.s32 2048, 2048
          %152 = vsyncadd [#allocation6], %s151
          %s153 = sshll.u32 [#allocation5], 4
          %s154 = int_to_ptr.vmem [resolvable:$true] %s153
          %159 = dma.hbm_to_vmem [thread:$0]  %s1, 2048, %s154, [#allocation6], 128, 128, 8
        $region16: #{tpu_custom_call.1} parent=11 // pred_fallthru
          _
        // Predicated region
        $region17: #{tpu_custom_call.1} parent=11 // pred_check
          %p160 = pneg %p85
        $region18: #{tpu_custom_call.1} parent=11 // pred_check_branch
          %162 = sbr.rel (%p160) target = $region20
        $region19: #{tpu_custom_call.1} parent=11 // pred_region
          %s164 = ssub.s32 2048, 2048
          %165 = vsyncadd [#allocation6], %s164
          %s166 = sshll.u32 [#allocation7], 4
          %s167 = int_to_ptr.vmem [resolvable:$true] %s166
          %172 = dma.hbm_to_vmem [thread:$0]  %s2, 2048, %s167, [#allocation6], 128, 128, 8
        $region20: #{tpu_custom_call.1} parent=11 // pred_fallthru
          _
        // Predicated region
        $region21: #{tpu_custom_call.1} parent=11 // pred_check
          %p173 = pneg %p106
        $region22: #{tpu_custom_call.1} parent=11 // pred_check_branch
          %175 = sbr.rel (%p173) target = $region24
        $region23: #{tpu_custom_call.1} parent=11 // pred_region
          _
        $region24: #{tpu_custom_call.1} parent=11 // pred_fallthru
          _
      $region12: #{tpu_custom_call.1} parent=5 // pred_fallthru
        _
      %p176 = scmp.lt.s32.totalorder %s17, 2
      // Predicated region
      $region25: #{tpu_custom_call.1} parent=5 // pred_check
        %p177 = pneg %p176
      $region26: #{tpu_custom_call.1} parent=5 // pred_check_branch
        %179 = sbr.rel (%p177) target = $region28
      $region27: #{tpu_custom_call.1} parent=5 // pred_region
        // Predicated region
        $region29: #{tpu_custom_call.1} parent=27 // pred_check
          %p180 = pneg %p37
        $region30: #{tpu_custom_call.1} parent=27 // pred_check_branch
          %182 = sbr.rel (%p180) target = $region32
        $region31: #{tpu_custom_call.1} parent=27 // pred_region
          %s183 = sand.u32 %s27, 1
          %s184 = scalar_lea.sflag [#allocation3], %s183
          %s185 = sand.u32 %s27, 1
          %s186 = smul.addr %s185, 8
          %s187 = scalar_lea.vmem [#allocation2], %s186
          %s189 = ssub.s32 128, 128
          %190 = vsyncadd %s184, %s189
          %s191 = smul.addr %s17, 128
          %s192 = scalar_lea.hbm %s0, %s191
          %s194 = sshll.u32 %s187, 4
          %s195 = int_to_ptr.vmem [resolvable:$true] %s194
          %197 = dma.hbm_to_vmem [thread:$0]  %s192, 128, %s195, %s184
        $region32: #{tpu_custom_call.1} parent=27 // pred_fallthru
          _
      $region28: #{tpu_custom_call.1} parent=5 // pred_fallthru
        _
      %p198 = scmp.le.s32.totalorder 1, %s17
      %p199 = scmp.lt.s32.totalorder %s17, 3
      %p200 = pnand %p198, %p199
      %p201 = pneg %p200
      // Predicated region
      $region33: #{tpu_custom_call.1} parent=5 // pred_check
        _
      $region34: #{tpu_custom_call.1} parent=5 // pred_check_branch
        %203 = sbr.rel (%p200) target = $region36
      $region35: #{tpu_custom_call.1} parent=5 // pred_region
        %s204 = ssub.s32 %s17, 1
        %s205 = sand.u32 %s30, 1
        %s206 = scalar_lea.sflag [#allocation3], %s205
        %s207 = sand.u32 %s30, 1
        %s208 = smul.addr %s207, 8
        %s209 = scalar_lea.vmem [#allocation2], %s208
        // Predicated region
        $region37: #{tpu_custom_call.1} parent=35 // pred_check
          %p210 = pneg %p43
        $region38: #{tpu_custom_call.1} parent=35 // pred_check_branch
          %212 = sbr.rel (%p210) target = $region40
        $region39: #{tpu_custom_call.1} parent=35 // pred_region
          %213 = dma.done %s206, 128
        $region40: #{tpu_custom_call.1} parent=35 // pred_fallthru
          _
        // Predicated region
        $region41: #{tpu_custom_call.1} parent=35 // pred_check
          %p214 = pneg %p64
        $region42: #{tpu_custom_call.1} parent=35 // pred_check_branch
          %216 = sbr.rel (%p214) target = $region44
        $region43: #{tpu_custom_call.1} parent=35 // pred_region
          %217 = dma.done [#allocation6], 2048
        $region44: #{tpu_custom_call.1} parent=35 // pred_fallthru
          _
        // Predicated region
        $region45: #{tpu_custom_call.1} parent=35 // pred_check
          %p218 = pneg %p85
        $region46: #{tpu_custom_call.1} parent=35 // pred_check_branch
          %220 = sbr.rel (%p218) target = $region48
        $region47: #{tpu_custom_call.1} parent=35 // pred_region
          %221 = dma.done [#allocation6], 2048
        $region48: #{tpu_custom_call.1} parent=35 // pred_fallthru
          _
        %s222 = sand.u32 %s30, 1
        %s223 = scalar_lea.sflag [#allocation3], %s222
        %s224 = sand.u32 %s30, 1
        %s225 = smul.addr %s224, 8
        %s226 = scalar_lea.vmem [#allocation2], %s225
        %p227 = pneg %p43
        %p228 = pneg %p40
        %p229 = pneg %p64
        %p230 = pneg %p61
        %p231 = pneg %p85
        %p232 = pneg %p82
        %p233 = pneg %p106
        %p234 = pneg %p103
        %p235 = pneg %p132
        %p236 = pneg %p129
        %s237 = sand.u32 %s119, 1
        %s238 = scalar_lea.sflag [#allocation4], %s237
        %s239 = sand.u32 %s119, 1
        %s240 = smul.addr %s239, 8
        %s241 = scalar_lea.vmem [#allocation8], %s240
        %v242 = vld [vmem:[%s209] sm:$0xff]
        %v243 = vld [vmem:[%s3] sm:$0x1]
        %v244 = vld [vmem:[%s3 + $0x1] sm:$0x1]
        %v245 = vld [vmem:[%s3 + $0x2] sm:$0x1]
        %v246 = vld [vmem:[%s3 + $0x3] sm:$0x1]
        %v247 = vld [vmem:[#allocation5] sm:$0xff]
        %v248 = vld [vmem:[#allocation5 + $0x8] sm:$0xff]
        %v249 = vld [vmem:[#allocation5 + $0x10] sm:$0xff]
        %v250 = vld [vmem:[#allocation5 + $0x18] sm:$0xff]
        %v251 = vld [vmem:[#allocation5 + $0x20] sm:$0xff]
        %v252 = vld [vmem:[#allocation5 + $0x28] sm:$0xff]
        %v253 = vld [vmem:[#allocation5 + $0x30] sm:$0xff]
        %v254 = vld [vmem:[#allocation5 + $0x38] sm:$0xff]
        %v255 = vld [vmem:[#allocation5 + $0x40] sm:$0xff]
        %v256 = vld [vmem:[#allocation5 + $0x48] sm:$0xff]
        %v257 = vld [vmem:[#allocation5 + $0x50] sm:$0xff]
        %v258 = vld [vmem:[#allocation5 + $0x58] sm:$0xff]
        %v259 = vld [vmem:[#allocation5 + $0x60] sm:$0xff]
        %v260 = vld [vmem:[#allocation5 + $0x68] sm:$0xff]
        %v261 = vld [vmem:[#allocation5 + $0x70] sm:$0xff]
        %v262 = vld [vmem:[#allocation5 + $0x78] sm:$0xff]
        %v263 = vlaneseq
        %v264 = vshrl.u32 %v263, 7
        %v265 = vsub.s32 0, %v264
        %v266 = vrot.slane %v243, %v265
        %267 = vmatprep.subr.mxu0 0.0
        %268 = vmatpush1.msra.mxu0 %v247
        %269 = vmatprep.subr.mxu0 0.0
        %270 = vmatpush1.msra.mxu0 %v248
        %271 = vmatprep.subr.mxu0 0.0
        %272 = vmatpush1.msra.mxu0 %v249
        %273 = vmatprep.subr.mxu0 0.0
        %274 = vmatpush1.msra.mxu0 %v250
        %275 = vmatprep.subr.mxu0 0.0
        %276 = vmatpush1.msra.mxu0 %v251
        %277 = vmatprep.subr.mxu0 0.0
        %278 = vmatpush1.msra.mxu0 %v252
        %279 = vmatprep.subr.mxu0 0.0
        %280 = vmatpush1.msra.mxu0 %v253
        %281 = vmatprep.subr.mxu0 0.0
        %282 = vmatpush1.msra.mxu0 %v254
        %283 = vmatprep.subr.mxu0 0.0
        %284 = vmatpush1.msra.mxu0 %v255
        %285 = vmatprep.subr.mxu0 0.0
        %286 = vmatpush1.msra.mxu0 %v256
        %287 = vmatprep.subr.mxu0 0.0
        %288 = vmatpush1.msra.mxu0 %v257
        %289 = vmatprep.subr.mxu0 0.0
        %290 = vmatpush1.msra.mxu0 %v258
        %291 = vmatprep.subr.mxu0 0.0
        %292 = vmatpush1.msra.mxu0 %v259
        %293 = vmatprep.subr.mxu0 0.0
        %294 = vmatpush1.msra.mxu0 %v260
        %295 = vmatprep.subr.mxu0 0.0
        %296 = vmatpush1.msra.mxu0 %v261
        %297 = vmatprep.subr.mxu0 0.0
        %298 = vmatpush1.msra.mxu0 %v262
        %299 = vmatprep.subr.mxu0 0.0
        %300 = vmatpush1.msra.mxu0 0.0
        %301 = vmatprep.subr.mxu0 0.0
        %302 = vmatpush1.msra.mxu0 0.0
        %303 = vmatprep.subr.mxu0 0.0
        %304 = vmatpush1.msra.mxu0 0.0
        %305 = vmatprep.subr.mxu0 0.0
        %306 = vmatpush1.msra.mxu0 0.0
        %307 = vmatprep.subr.mxu0 0.0
        %308 = vmatpush1.msra.mxu0 0.0
        %309 = vmatprep.subr.mxu0 0.0
        %310 = vmatpush1.msra.mxu0 0.0
        %311 = vmatprep.subr.mxu0 0.0
        %312 = vmatpush1.msra.mxu0 0.0
        %313 = vmatprep.subr.mxu0 0.0
        %314 = vmatpush1.msra.mxu0 0.0
        %315 = vmatprep.subr.mxu0 0.0
        %316 = vmatpush1.msra.mxu0 0.0
        %317 = vmatprep.subr.mxu0 0.0
        %318 = vmatpush1.msra.mxu0 0.0
        %319 = vmatprep.subr.mxu0 0.0
        %320 = vmatpush1.msra.mxu0 0.0
        %321 = vmatprep.subr.mxu0 0.0
        %322 = vmatpush1.msra.mxu0 0.0
        %323 = vmatprep.subr.mxu0 0.0
        %324 = vmatpush1.msra.mxu0 0.0
        %325 = vmatprep.subr.mxu0 0.0
        %326 = vmatpush1.msra.mxu0 0.0
        %327 = vmatprep.subr.mxu0 0.0
        %328 = vmatpush1.msra.mxu0 0.0
        %329 = vmatprep.subr.mxu0 0.0
        %330 = vmatpush1.msra.mxu0 0.0
        %331 = vmatprep.mubr.f32.mxu0 0.0
        %332 = vmatmul.mubr.f32.gmra.mrb[0].mxu0 %v242
        %v333 = vpop.f32.mrb[0].mxu0
        %v334 = vadd.f32 %v266, %v333
        %v335 = vpop.f32.mrb[0].mxu0
        %336 = vdwg.mxu0
        %v337 = vmul.f32 %v334, 0.5
        %v338 = vmul.f32 %v334, 0.70710677
        %v339 = verf.f32.pop %v338
        %v340 = vadd.f32 %v339, 1.0
        %v341 = vmul.f32 %v337, %v340
        %v342 = vld [vmem:[#allocation7] sm:$0xff]
        %v343 = vld [vmem:[#allocation7 + $0x8] sm:$0xff]
        %v344 = vld [vmem:[#allocation7 + $0x10] sm:$0xff]
        %v345 = vld [vmem:[#allocation7 + $0x18] sm:$0xff]
        %v346 = vld [vmem:[#allocation7 + $0x20] sm:$0xff]
        %v347 = vld [vmem:[#allocation7 + $0x28] sm:$0xff]
        %v348 = vld [vmem:[#allocation7 + $0x30] sm:$0xff]
        %v349 = vld [vmem:[#allocation7 + $0x38] sm:$0xff]
        %v350 = vld [vmem:[#allocation7 + $0x40] sm:$0xff]
        %v351 = vld [vmem:[#allocation7 + $0x48] sm:$0xff]
        %v352 = vld [vmem:[#allocation7 + $0x50] sm:$0xff]
        %v353 = vld [vmem:[#allocation7 + $0x58] sm:$0xff]
        %v354 = vld [vmem:[#allocation7 + $0x60] sm:$0xff]
        %v355 = vld [vmem:[#allocation7 + $0x68] sm:$0xff]
        %v356 = vld [vmem:[#allocation7 + $0x70] sm:$0xff]
        %v357 = vld [vmem:[#allocation7 + $0x78] sm:$0xff]
        %v358 = vlaneseq
        %v359 = vshrl.u32 %v358, 7
        %v360 = vsub.s32 0, %v359
        %v361 = vrot.slane %v244, %v360
        %362 = vmatprep.subr.mxu0 0.0
        %363 = vmatpush1.msra.mxu0 %v342
        %364 = vmatprep.subr.mxu0 0.0
        %365 = vmatpush1.msra.mxu0 %v343
        %366 = vmatprep.subr.mxu0 0.0
        %367 = vmatpush1.msra.mxu0 %v344
        %368 = vmatprep.subr.mxu0 0.0
        %369 = vmatpush1.msra.mxu0 %v345
        %370 = vmatprep.subr.mxu0 0.0
        %371 = vmatpush1.msra.mxu0 %v346
        %372 = vmatprep.subr.mxu0 0.0
        %373 = vmatpush1.msra.mxu0 %v347
        %374 = vmatprep.subr.mxu0 0.0
        %375 = vmatpush1.msra.mxu0 %v348
        %376 = vmatprep.subr.mxu0 0.0
        %377 = vmatpush1.msra.mxu0 %v349
        %378 = vmatprep.subr.mxu0 0.0
        %379 = vmatpush1.msra.mxu0 %v350
        %380 = vmatprep.subr.mxu0 0.0
        %381 = vmatpush1.msra.mxu0 %v351
        %382 = vmatprep.subr.mxu0 0.0
        %383 = vmatpush1.msra.mxu0 %v352
        %384 = vmatprep.subr.mxu0 0.0
        %385 = vmatpush1.msra.mxu0 %v353
        %386 = vmatprep.subr.mxu0 0.0
        %387 = vmatpush1.msra.mxu0 %v354
        %388 = vmatprep.subr.mxu0 0.0
        %389 = vmatpush1.msra.mxu0 %v355
        %390 = vmatprep.subr.mxu0 0.0
        %391 = vmatpush1.msra.mxu0 %v356
        %392 = vmatprep.subr.mxu0 0.0
        %393 = vmatpush1.msra.mxu0 %v357
        %394 = vmatprep.subr.mxu0 0.0
        %395 = vmatpush1.msra.mxu0 0.0
        %396 = vmatprep.subr.mxu0 0.0
        %397 = vmatpush1.msra.mxu0 0.0
        %398 = vmatprep.subr.mxu0 0.0
        %399 = vmatpush1.msra.mxu0 0.0
        %400 = vmatprep.subr.mxu0 0.0
        %401 = vmatpush1.msra.mxu0 0.0
        %402 = vmatprep.subr.mxu0 0.0
        %403 = vmatpush1.msra.mxu0 0.0
        %404 = vmatprep.subr.mxu0 0.0
        %405 = vmatpush1.msra.mxu0 0.0
        %406 = vmatprep.subr.mxu0 0.0
        %407 = vmatpush1.msra.mxu0 0.0
        %408 = vmatprep.subr.mxu0 0.0
        %409 = vmatpush1.msra.mxu0 0.0
        %410 = vmatprep.subr.mxu0 0.0
        %411 = vmatpush1.msra.mxu0 0.0
        %412 = vmatprep.subr.mxu0 0.0
        %413 = vmatpush1.msra.mxu0 0.0
        %414 = vmatprep.subr.mxu0 0.0
        %415 = vmatpush1.msra.mxu0 0.0
        %416 = vmatprep.subr.mxu0 0.0
        %417 = vmatpush1.msra.mxu0 0.0
        %418 = vmatprep.subr.mxu0 0.0
        %419 = vmatpush1.msra.mxu0 0.0
        %420 = vmatprep.subr.mxu0 0.0
        %421 = vmatpush1.msra.mxu0 0.0
        %422 = vmatprep.subr.mxu0 0.0
        %423 = vmatpush1.msra.mxu0 0.0
        %424 = vmatprep.subr.mxu0 0.0
        %425 = vmatpush1.msra.mxu0 0.0
        %426 = vmatprep.mubr.f32.mxu0 0.0
        %427 = vmatmul.mubr.f32.gmra.mrb[0].mxu0 %v341
        %v428 = vpop.f32.mrb[0].mxu0
        %v429 = vadd.f32 %v361, %v428
        %v430 = vpop.f32.mrb[0].mxu0
        %431 = vdwg.mxu0
        %v432 = vadd.f32 %v242, %v429
        %433 = vadd.xlane.f32.xlu0 %v432
        %v434 = vpop.xlane.xlu0 %433
        %v435 = vmul.f32 %v434, 0.03125
        %v436 = vsub.f32 %v432, %v435
        %v437 = vmul.f32 %v436, %v436
        %438 = vadd.xlane.f32.xlu0 %v437
        %v439 = vpop.xlane.xlu0 %438
        %v440 = vmul.f32 %v435, %v435
        %v441 = vmul.f32 %v440, 96.0
        %v442 = vsub.f32 %v439, %v441
        %v443 = vmul.f32 %v442, 0.03125
        %v444 = vadd.f32 %v443, 1e-05
        %v445 = vrsqrt.pop %v444
        %v446 = vmul.f32 %v436, %v445
        %v447 = vlaneseq
        %v448 = vshrl.u32 %v447, 7
        %v449 = vsub.s32 0, %v448
        %v450 = vrot.slane %v245, %v449
        %v451 = vmul.f32 %v446, %v450
        %v452 = vlaneseq
        %v453 = vshrl.u32 %v452, 7
        %v454 = vsub.s32 0, %v453
        %v455 = vrot.slane %v246, %v454
        %v456 = vadd.f32 %v451, %v455
        %457 = vst [vmem:[%s241] sm:$0xff] %v456
        %s458 = sand.u32 %s119, 1
        %s459 = scalar_lea.sflag [#allocation4], %s458
        %s460 = sand.u32 %s119, 1
        %s461 = smul.addr %s460, 8
        %s462 = scalar_lea.vmem [#allocation8], %s461
        // Predicated region
        $region49: #{tpu_custom_call.1} parent=35 // pred_check
          %p463 = pneg %p129
        $region50: #{tpu_custom_call.1} parent=35 // pred_check_branch
          %465 = sbr.rel (%p463) target = $region52
        $region51: #{tpu_custom_call.1} parent=35 // pred_region
          %s467 = ssub.s32 128, 128
          %468 = vsyncadd %s459, %s467
          %s469 = smul.addr %s22, 128
          %s470 = scalar_lea.hbm %s4, %s469
          %s472 = sshll.u32 %s462, 4
          %s473 = int_to_ptr.vmem [resolvable:$true] %s472
          %475 = dma.vmem_to_hbm [thread:$0]  %s473, 128, %s470, %s459
        $region52: #{tpu_custom_call.1} parent=35 // pred_fallthru
          _
      $region36: #{tpu_custom_call.1} parent=5 // pred_fallthru
        _
      %p476 = scmp.le.s32.totalorder 2, %s17
      // Predicated region
      $region53: #{tpu_custom_call.1} parent=5 // pred_check
        %p477 = pneg %p476
      $region54: #{tpu_custom_call.1} parent=5 // pred_check_branch
        %479 = sbr.rel (%p477) target = $region56
      $region55: #{tpu_custom_call.1} parent=5 // pred_region
        %s480 = ssub.s32 %s17, 2
        // Predicated region
        $region57: #{tpu_custom_call.1} parent=55 // pred_check
          %p481 = pneg %p135
        $region58: #{tpu_custom_call.1} parent=55 // pred_check_branch
          %483 = sbr.rel (%p481) target = $region60
        $region59: #{tpu_custom_call.1} parent=55 // pred_region
          %s484 = sand.u32 %s120, 1
          %s485 = scalar_lea.sflag [#allocation4], %s484
          %s486 = sand.u32 %s120, 1
          %s487 = smul.addr %s486, 8
          %s488 = scalar_lea.vmem [#allocation8], %s487
          %489 = dma.done %s485, 128
        $region60: #{tpu_custom_call.1} parent=55 // pred_fallthru
          _
      $region56: #{tpu_custom_call.1} parent=5 // pred_fallthru
        _
    $region6: #{tpu_custom_call.1} parent=1 // loop_footer
      %s21 = sadd.s32 1, %s17
    $region7: #{tpu_custom_call.1} parent=1 // loop_footer_branch
      %16 = sbr.rel target = $region3
    $region8: #{tpu_custom_call.1} parent=1 // loop_exit
      _
    %490 = vsyncpa [#allocation3], 1
    %s491 = scalar_lea.sflag [#allocation3], 1
    %492 = vsyncpa %s491, 1
    %493 = vsyncpa [#allocation6], 1
    %494 = vsyncpa [#allocation4], 1
    %s495 = scalar_lea.sflag [#allocation4], 1
    %496 = vsyncpa %s495, 1

// kernel: tpu_custom_call.1
$region0: #{tpu_custom_call.1}
  #allocation0 [shape = 'u32[]', space=smem, size = 0x4, offset = 0x4, fixed_abs, tag = 'smem constant byte address 0x4 - core index']
  #allocation1 [shape = 'u32[144,128]{1,0:T(1,128)}', space=vmem, size = 0x12000, scoped, tag = 'internal scratch']
  %s0 = inlined_call_operand.hbm [shape: f32[16,128], index: 0, kind: input, shape index: {}]
  %s1 = inlined_call_operand.hbm [shape: f32[128,128], index: 1, kind: input, shape index: {}]
  %s2 = inlined_call_operand.hbm [shape: f32[128,128], index: 2, kind: input, shape index: {}]
  %s3 = inlined_call_operand.vmem [shape: f32[4,128], index: 3, kind: input, shape index: {}]
  %s4 = inlined_call_operand.hbm [shape: f32[16,128], index: 4, kind: output, shape index: {}]
  %s5 = sld [smem:[#allocation0]]
  $region61: #{tpu_custom_call.1} parent=0
    _
  %s7 = ssub.s32 1, %s5
  %s8 = scalar_select 0, %s7, %s5
  $region1: #{tpu_custom_call.1} parent=0
    #allocation2 [shape = 'u8[8192]{0}', space=vmem, size = 0x2000, scoped, tag = 'input window, operand 0']
    #allocation3 [shape = 's32[2]{0}', space=sflag, size = 0x8, scoped, tag = 'scoped memory for tpu_custom_call.1']
    #allocation4 [shape = 's32[2]{0}', space=sflag, size = 0x8, scoped, tag = 'scoped memory for tpu_custom_call.1']
    #allocation5 [shape = 'u8[65536]{0}', space=vmem, size = 0x10000, scoped, tag = 'input window, operand 1, single buffered']
    #allocation6 [shape = 's32[1]{0}', space=sflag, size = 0x4, scoped, tag = 'scoped memory for tpu_custom_call.1']
    #allocation7 [shape = 'u8[65536]{0}', space=vmem, size = 0x10000, scoped, tag = 'input window, operand 2, single buffered']
    #allocation8 [shape = 'u8[8192]{0}', space=vmem, size = 0x2000, scoped, tag = 'output window, operand 0']
    %9 = vsyncpa [#allocation3], 0
    %s10 = scalar_lea.sflag [#allocation3], 1
    %11 = vsyncpa %s10, 0
    %12 = vsyncpa [#allocation6], 0
    %13 = vsyncpa [#allocation4], 0
    %s14 = scalar_lea.sflag [#allocation4], 1
    %15 = vsyncpa %s14, 0
    loop: start=0, step=1, limit=4
    $region2: #{tpu_custom_call.1} parent=1 // loop_pre_header
      _
    $region3: #{tpu_custom_call.1} parent=1 // loop_header
      %s17 = sphi 0, %s21
      %p18 = scmp.ge.s32.totalorder %s17, 4
      %s27 = sphi 0, %s29
      %s30 = sphi 0, %s27
      %s31 = sphi 0, %s30
      %s47 = sphi 0, %s31
      %s51 = sphi 0, %s51
      %s53 = sphi 0, %s51
      %s54 = sphi 0, %s53
      %s68 = sphi 0, %s54
      %s72 = sphi 0, %s72
      %s74 = sphi 0, %s72
      %s75 = sphi 0, %s74
      %s89 = sphi 0, %s75
      %s93 = sphi 0, %s93
      %s95 = sphi 0, %s93
      %s96 = sphi 0, %s95
      %s110 = sphi 0, %s96
      %s116 = sphi 0, %s118
      %s119 = sphi 0, %s116
      %s120 = sphi 0, %s119
      %s136 = sphi 0, %s120
    $region4: #{tpu_custom_call.1} parent=1 // loop_header_branch
      %20 = sbr.rel (%p18) target = $region8
    $region5: #{tpu_custom_call.1} parent=1 // loop_body
      %s22 = ssub.s32 %s17, 1
      %s23 = ssub.s32 %s17, 2
      %s24 = sadd.s32 %s17, 1
      %s25 = ssub.s32 %s17, %s24
      %p26 = scmp.eq.s32.totalorder %s25, 0
      %s28 = sadd.s32 %s27, 1
      %s29 = scalar_select %p26, %s27, %s28
      %p32 = pneg %p26
      %p33 = scmp.eq.s32.totalorder %s17, 1
      %p34 = por %p32, %p33
      %p35 = scmp.ne.s32.totalorder %s27, %s30
      %p36 = scmp.eq.s32.totalorder %s17, 0
      %p37 = por %p35, %p36
      %p38 = scmp.ne.s32.totalorder %s27, %s30
      %p39 = scmp.eq.s32.totalorder %s22, 1
      %p40 = por %p38, %p39
      %p41 = scmp.ne.s32.totalorder %s30, %s31
      %p42 = scmp.eq.s32.totalorder %s22, 0
      %p43 = por %p41, %p42
      %p44 = scmp.ne.s32.totalorder %s30, %s31
      %p45 = scmp.eq.s32.totalorder %s23, 1
      %p46 = por %p44, %p45
      %p48 = scmp.ne.s32.totalorder %s31, %s47
      %p49 = scmp.eq.s32.totalorder %s23, 0
      %p50 = por %p48, %p49
      %s52 = sadd.s32 %s51, 1
      %p55 = scmp.eq.s32.totalorder %s17, 1
      %p56 = scmp.ne.s32.totalorder %s51, %s53
      %p57 = scmp.eq.s32.totalorder %s17, 0
      %p58 = por %p56, %p57
      %p59 = scmp.ne.s32.totalorder %s51, %s53
      %p60 = scmp.eq.s32.totalorder %s22, 1
      %p61 = por %p59, %p60
      %p62 = scmp.ne.s32.totalorder %s53, %s54
      %p63 = scmp.eq.s32.totalorder %s22, 0
      %p64 = por %p62, %p63
      %p65 = scmp.ne.s32.totalorder %s53, %s54
      %p66 = scmp.eq.s32.totalorder %s23, 1
      %p67 = por %p65, %p66
      %p69 = scmp.ne.s32.totalorder %s54, %s68
      %p70 = scmp.eq.s32.totalorder %s23, 0
      %p71 = por %p69, %p70
      %s73 = sadd.s32 %s72, 1
      %p76 = scmp.eq.s32.totalorder %s17, 1
      %p77 = scmp.ne.s32.totalorder %s72, %s74
      %p78 = scmp.eq.s32.totalorder %s17, 0
      %p79 = por %p77, %p78
      %p80 = scmp.ne.s32.totalorder %s72, %s74
      %p81 = scmp.eq.s32.totalorder %s22, 1
      %p82 = por %p80, %p81
      %p83 = scmp.ne.s32.totalorder %s74, %s75
      %p84 = scmp.eq.s32.totalorder %s22, 0
      %p85 = por %p83, %p84
      %p86 = scmp.ne.s32.totalorder %s74, %s75
      %p87 = scmp.eq.s32.totalorder %s23, 1
      %p88 = por %p86, %p87
      %p90 = scmp.ne.s32.totalorder %s75, %s89
      %p91 = scmp.eq.s32.totalorder %s23, 0
      %p92 = por %p90, %p91
      %s94 = sadd.s32 %s93, 1
      %p97 = scmp.eq.s32.totalorder %s17, 1
      %p98 = scmp.ne.s32.totalorder %s93, %s95
      %p99 = scmp.eq.s32.totalorder %s17, 0
      %p100 = por %p98, %p99
      %p101 = scmp.ne.s32.totalorder %s93, %s95
      %p102 = scmp.eq.s32.totalorder %s22, 1
      %p103 = por %p101, %p102
      %p104 = scmp.ne.s32.totalorder %s95, %s96
      %p105 = scmp.eq.s32.totalorder %s22, 0
      %p106 = por %p104, %p105
      %p107 = scmp.ne.s32.totalorder %s95, %s96
      %p108 = scmp.eq.s32.totalorder %s23, 1
      %p109 = por %p107, %p108
      %p111 = scmp.ne.s32.totalorder %s96, %s110
      %p112 = scmp.eq.s32.totalorder %s23, 0
      %p113 = por %p111, %p112
      %s114 = ssub.s32 %s17, %s24
      %p115 = scmp.eq.s32.totalorder %s114, 0
      %s117 = sadd.s32 %s116, 1
      %s118 = scalar_select %p115, %s116, %s117
      %p121 = pneg %p115
      %p122 = scmp.eq.s32.totalorder %s17, 1
      %p123 = por %p121, %p122
      %p124 = scmp.ne.s32.totalorder %s116, %s119
      %p125 = scmp.eq.s32.totalorder %s17, 0
      %p126 = por %p124, %p125
      %p127 = scmp.ne.s32.totalorder %s116, %s119
      %p128 = scmp.eq.s32.totalorder %s22, 1
      %p129 = por %p127, %p128
      %p130 = scmp.ne.s32.totalorder %s119, %s120
      %p131 = scmp.eq.s32.totalorder %s22, 0
      %p132 = por %p130, %p131
      %p133 = scmp.ne.s32.totalorder %s119, %s120
      %p134 = scmp.eq.s32.totalorder %s23, 1
      %p135 = por %p133, %p134
      %p137 = scmp.ne.s32.totalorder %s120, %s136
      %p138 = scmp.eq.s32.totalorder %s23, 0
      %p139 = por %p137, %p138
      %p140 = scmp.le.s32.totalorder 1, %s17
      %p141 = scmp.lt.s32.totalorder %s17, 3
      %p142 = pnand %p140, %p141
      %p143 = pneg %p142
      // Predicated region
      $region9: #{tpu_custom_call.1} parent=5 // pred_check
        _
      $region10: #{tpu_custom_call.1} parent=5 // pred_check_branch
        %145 = sbr.rel (%p142) target = $region12
      $region11: #{tpu_custom_call.1} parent=5 // pred_region
        %s146 = ssub.s32 %s17, 1
        // Predicated region
        $region13: #{tpu_custom_call.1} parent=11 // pred_check
          %p147 = pneg %p64
        $region14: #{tpu_custom_call.1} parent=11 // pred_check_branch
          %149 = sbr.rel (%p147) target = $region16
        $region15: #{tpu_custom_call.1} parent=11 // pred_region
          %s151 = ssub.s32 2048, 2048
          %152 = vsyncadd [#allocation6], %s151
          %s153 = sshll.u32 [#allocation5], 4
          %s154 = int_to_ptr.vmem [resolvable:$true] %s153
          %159 = dma.hbm_to_vmem [thread:$0]  %s1, 2048, %s154, [#allocation6], 128, 128, 8
        $region16: #{tpu_custom_call.1} parent=11 // pred_fallthru
          _
        // Predicated region
        $region17: #{tpu_custom_call.1} parent=11 // pred_check
          %p160 = pneg %p85
        $region18: #{tpu_custom_call.1} parent=11 // pred_check_branch
          %162 = sbr.rel (%p160) target = $region20
        $region19: #{tpu_custom_call.1} parent=11 // pred_region
          %s164 = ssub.s32 2048, 2048
          %165 = vsyncadd [#allocation6], %s164
          %s166 = sshll.u32 [#allocation7], 4
          %s167 = int_to_ptr.vmem [resolvable:$true] %s166
          %172 = dma.hbm_to_vmem [thread:$0]  %s2, 2048, %s167, [#allocation6], 128, 128, 8
        $region20: #{tpu_custom_call.1} parent=11 // pred_fallthru
          _
        // Predicated region
        $region21: #{tpu_custom_call.1} parent=11 // pred_check
          %p173 = pneg %p106
        $region22: #{tpu_custom_call.1} parent=11 // pred_check_branch
          %175 = sbr.rel (%p173) target = $region24
        $region23: #{tpu_custom_call.1} parent=11 // pred_region
          _
        $region24: #{tpu_custom_call.1} parent=11 // pred_fallthru
          _
      $region12: #{tpu_custom_call.1} parent=5 // pred_fallthru
        _
      %p176 = scmp.lt.s32.totalorder %s17, 2
      // Predicated region
      $region25: #{tpu_custom_call.1} parent=5 // pred_check
        %p177 = pneg %p176
      $region26: #{tpu_custom_call.1} parent=5 // pred_check_branch
        %179 = sbr.rel (%p177) target = $region28
      $region27: #{tpu_custom_call.1} parent=5 // pred_region
        // Predicated region
        $region29: #{tpu_custom_call.1} parent=27 // pred_check
          %p180 = pneg %p37
        $region30: #{tpu_custom_call.1} parent=27 // pred_check_branch
          %182 = sbr.rel (%p180) target = $region32
        $region31: #{tpu_custom_call.1} parent=27 // pred_region
          %s183 = sand.u32 %s27, 1
          %s184 = scalar_lea.sflag [#allocation3], %s183
          %s185 = sand.u32 %s27, 1
          %s186 = smul.addr %s185, 8
          %s187 = scalar_lea.vmem [#allocation2], %s186
          %s189 = ssub.s32 128, 128
          %190 = vsyncadd %s184, %s189
          %s191 = smul.addr %s17, 128
          %s192 = scalar_lea.hbm %s0, %s191
          %s194 = sshll.u32 %s187, 4
          %s195 = int_to_ptr.vmem [resolvable:$true] %s194
          %197 = dma.hbm_to_vmem [thread:$0]  %s192, 128, %s195, %s184
        $region32: #{tpu_custom_call.1} parent=27 // pred_fallthru
          _
      $region28: #{tpu_custom_call.1} parent=5 // pred_fallthru
        _
      %p198 = scmp.le.s32.totalorder 1, %s17
      %p199 = scmp.lt.s32.totalorder %s17, 3
      %p200 = pnand %p198, %p199
      %p201 = pneg %p200
      // Predicated region
      $region33: #{tpu_custom_call.1} parent=5 // pred_check
        _
      $region34: #{tpu_custom_call.1} parent=5 // pred_check_branch
        %203 = sbr.rel (%p200) target = $region36
      $region35: #{tpu_custom_call.1} parent=5 // pred_region
        %s204 = ssub.s32 %s17, 1
        %s205 = sand.u32 %s30, 1
        %s206 = scalar_lea.sflag [#allocation3], %s205
        %s207 = sand.u32 %s30, 1
        %s208 = smul.addr %s207, 8
        %s209 = scalar_lea.vmem [#allocation2], %s208
        // Predicated region
        $region37: #{tpu_custom_call.1} parent=35 // pred_check
          %p210 = pneg %p43
        $region38: #{tpu_custom_call.1} parent=35 // pred_check_branch
          %212 = sbr.rel (%p210) target = $region40
        $region39: #{tpu_custom_call.1} parent=35 // pred_region
          %213 = dma.done %s206, 128
        $region40: #{tpu_custom_call.1} parent=35 // pred_fallthru
          _
        // Predicated region
        $region41: #{tpu_custom_call.1} parent=35 // pred_check
          %p214 = pneg %p64
        $region42: #{tpu_custom_call.1} parent=35 // pred_check_branch
          %216 = sbr.rel (%p214) target = $region44
        $region43: #{tpu_custom_call.1} parent=35 // pred_region
          %217 = dma.done [#allocation6], 2048
        $region44: #{tpu_custom_call.1} parent=35 // pred_fallthru
          _
        // Predicated region
        $region45: #{tpu_custom_call.1} parent=35 // pred_check
          %p218 = pneg %p85
        $region46: #{tpu_custom_call.1} parent=35 // pred_check_branch
          %220 = sbr.rel (%p218) target = $region48
        $region47: #{tpu_custom_call.1} parent=35 // pred_region
          %221 = dma.done [#allocation6], 2048
        $region48: #{tpu_custom_call.1} parent=35 // pred_fallthru
          _
        %s222 = sand.u32 %s30, 1
        %s223 = scalar_lea.sflag [#allocation3], %s222
        %s224 = sand.u32 %s30, 1
        %s225 = smul.addr %s224, 8
        %s226 = scalar_lea.vmem [#allocation2], %s225
        %p227 = pneg %p43
        %p228 = pneg %p40
        %p229 = pneg %p64
        %p230 = pneg %p61
        %p231 = pneg %p85
        %p232 = pneg %p82
        %p233 = pneg %p106
        %p234 = pneg %p103
        %p235 = pneg %p132
        %p236 = pneg %p129
        %s237 = sand.u32 %s119, 1
        %s238 = scalar_lea.sflag [#allocation4], %s237
        %s239 = sand.u32 %s119, 1
        %s240 = smul.addr %s239, 8
        %s241 = scalar_lea.vmem [#allocation8], %s240
        %v242 = vld [vmem:[%s209] sm:$0xff]
        %v243 = vld [vmem:[%s3] sm:$0x1]
        %v244 = vld [vmem:[%s3 + $0x1] sm:$0x1]
        %v245 = vld [vmem:[%s3 + $0x2] sm:$0x1]
        %v246 = vld [vmem:[%s3 + $0x3] sm:$0x1]
        %v247 = vld [vmem:[#allocation5] sm:$0xff]
        %v248 = vld [vmem:[#allocation5 + $0x8] sm:$0xff]
        %v249 = vld [vmem:[#allocation5 + $0x10] sm:$0xff]
        %v250 = vld [vmem:[#allocation5 + $0x18] sm:$0xff]
        %v251 = vld [vmem:[#allocation5 + $0x20] sm:$0xff]
        %v252 = vld [vmem:[#allocation5 + $0x28] sm:$0xff]
        %v253 = vld [vmem:[#allocation5 + $0x30] sm:$0xff]
        %v254 = vld [vmem:[#allocation5 + $0x38] sm:$0xff]
        %v255 = vld [vmem:[#allocation5 + $0x40] sm:$0xff]
        %v256 = vld [vmem:[#allocation5 + $0x48] sm:$0xff]
        %v257 = vld [vmem:[#allocation5 + $0x50] sm:$0xff]
        %v258 = vld [vmem:[#allocation5 + $0x58] sm:$0xff]
        %v259 = vld [vmem:[#allocation5 + $0x60] sm:$0xff]
        %v260 = vld [vmem:[#allocation5 + $0x68] sm:$0xff]
        %v261 = vld [vmem:[#allocation5 + $0x70] sm:$0xff]
        %v262 = vld [vmem:[#allocation5 + $0x78] sm:$0xff]
        %v263 = vlaneseq
        %v264 = vshrl.u32 %v263, 7
        %v265 = vsub.s32 0, %v264
        %v266 = vrot.slane %v243, %v265
        %267 = vmatprep.subr.mxu0 0.0
        %268 = vmatpush1.msra.mxu0 %v247
        %269 = vmatprep.subr.mxu0 0.0
        %270 = vmatpush1.msra.mxu0 %v248
        %271 = vmatprep.subr.mxu0 0.0
        %272 = vmatpush1.msra.mxu0 %v249
        %273 = vmatprep.subr.mxu0 0.0
        %274 = vmatpush1.msra.mxu0 %v250
        %275 = vmatprep.subr.mxu0 0.0
        %276 = vmatpush1.msra.mxu0 %v251
        %277 = vmatprep.subr.mxu0 0.0
        %278 = vmatpush1.msra.mxu0 %v252
        %279 = vmatprep.subr.mxu0 0.0
        %280 = vmatpush1.msra.mxu0 %v253
        %281 = vmatprep.subr.mxu0 0.0
        %282 = vmatpush1.msra.mxu0 %v254
        %283 = vmatprep.subr.mxu0 0.0
        %284 = vmatpush1.msra.mxu0 %v255
        %285 = vmatprep.subr.mxu0 0.0
        %286 = vmatpush1.msra.mxu0 %v256
        %287 = vmatprep.subr.mxu0 0.0
        %288 = vmatpush1.msra.mxu0 %v257
        %289 = vmatprep.subr.mxu0 0.0
        %290 = vmatpush1.msra.mxu0 %v258
        %291 = vmatprep.subr.mxu0 0.0
        %292 = vmatpush1.msra.mxu0 %v259
        %293 = vmatprep.subr.mxu0 0.0
        %294 = vmatpush1.msra.mxu0 %v260
        %295 = vmatprep.subr.mxu0 0.0
        %296 = vmatpush1.msra.mxu0 %v261
        %297 = vmatprep.subr.mxu0 0.0
        %298 = vmatpush1.msra.mxu0 %v262
        %299 = vmatprep.subr.mxu0 0.0
        %300 = vmatpush1.msra.mxu0 0.0
        %301 = vmatprep.subr.mxu0 0.0
        %302 = vmatpush1.msra.mxu0 0.0
        %303 = vmatprep.subr.mxu0 0.0
        %304 = vmatpush1.msra.mxu0 0.0
        %305 = vmatprep.subr.mxu0 0.0
        %306 = vmatpush1.msra.mxu0 0.0
        %307 = vmatprep.subr.mxu0 0.0
        %308 = vmatpush1.msra.mxu0 0.0
        %309 = vmatprep.subr.mxu0 0.0
        %310 = vmatpush1.msra.mxu0 0.0
        %311 = vmatprep.subr.mxu0 0.0
        %312 = vmatpush1.msra.mxu0 0.0
        %313 = vmatprep.subr.mxu0 0.0
        %314 = vmatpush1.msra.mxu0 0.0
        %315 = vmatprep.subr.mxu0 0.0
        %316 = vmatpush1.msra.mxu0 0.0
        %317 = vmatprep.subr.mxu0 0.0
        %318 = vmatpush1.msra.mxu0 0.0
        %319 = vmatprep.subr.mxu0 0.0
        %320 = vmatpush1.msra.mxu0 0.0
        %321 = vmatprep.subr.mxu0 0.0
        %322 = vmatpush1.msra.mxu0 0.0
        %323 = vmatprep.subr.mxu0 0.0
        %324 = vmatpush1.msra.mxu0 0.0
        %325 = vmatprep.subr.mxu0 0.0
        %326 = vmatpush1.msra.mxu0 0.0
        %327 = vmatprep.subr.mxu0 0.0
        %328 = vmatpush1.msra.mxu0 0.0
        %329 = vmatprep.subr.mxu0 0.0
        %330 = vmatpush1.msra.mxu0 0.0
        %331 = vmatprep.mubr.f32.mxu0 0.0
        %332 = vmatmul.mubr.f32.gmra.mrb[0].mxu0 %v242
        %v333 = vpop.f32.mrb[0].mxu0
        %v334 = vadd.f32 %v266, %v333
        %v335 = vpop.f32.mrb[0].mxu0
        %336 = vdwg.mxu0
        %v337 = vmul.f32 %v334, 0.5
        %v338 = vmul.f32 %v334, 0.70710677
        %v339 = verf.f32.pop %v338
        %v340 = vadd.f32 %v339, 1.0
        %v341 = vmul.f32 %v337, %v340
        %v342 = vld [vmem:[#allocation7] sm:$0xff]
        %v343 = vld [vmem:[#allocation7 + $0x8] sm:$0xff]
        %v344 = vld [vmem:[#allocation7 + $0x10] sm:$0xff]
        %v345 = vld [vmem:[#allocation7 + $0x18] sm:$0xff]
        %v346 = vld [vmem:[#allocation7 + $0x20] sm:$0xff]
        %v347 = vld [vmem:[#allocation7 + $0x28] sm:$0xff]
        %v348 = vld [vmem:[#allocation7 + $0x30] sm:$0xff]
        %v349 = vld [vmem:[#allocation7 + $0x38] sm:$0xff]
        %v350 = vld [vmem:[#allocation7 + $0x40] sm:$0xff]
        %v351 = vld [vmem:[#allocation7 + $0x48] sm:$0xff]
        %v352 = vld [vmem:[#allocation7 + $0x50] sm:$0xff]
        %v353 = vld [vmem:[#allocation7 + $0x58] sm:$0xff]
        %v354 = vld [vmem:[#allocation7 + $0x60] sm:$0xff]
        %v355 = vld [vmem:[#allocation7 + $0x68] sm:$0xff]
        %v356 = vld [vmem:[#allocation7 + $0x70] sm:$0xff]
        %v357 = vld [vmem:[#allocation7 + $0x78] sm:$0xff]
        %v358 = vlaneseq
        %v359 = vshrl.u32 %v358, 7
        %v360 = vsub.s32 0, %v359
        %v361 = vrot.slane %v244, %v360
        %362 = vmatprep.subr.mxu0 0.0
        %363 = vmatpush1.msra.mxu0 %v342
        %364 = vmatprep.subr.mxu0 0.0
        %365 = vmatpush1.msra.mxu0 %v343
        %366 = vmatprep.subr.mxu0 0.0
        %367 = vmatpush1.msra.mxu0 %v344
        %368 = vmatprep.subr.mxu0 0.0
        %369 = vmatpush1.msra.mxu0 %v345
        %370 = vmatprep.subr.mxu0 0.0
        %371 = vmatpush1.msra.mxu0 %v346
        %372 = vmatprep.subr.mxu0 0.0
        %373 = vmatpush1.msra.mxu0 %v347
        %374 = vmatprep.subr.mxu0 0.0
        %375 = vmatpush1.msra.mxu0 %v348
        %376 = vmatprep.subr.mxu0 0.0
        %377 = vmatpush1.msra.mxu0 %v349
        %378 = vmatprep.subr.mxu0 0.0
        %379 = vmatpush1.msra.mxu0 %v350
        %380 = vmatprep.subr.mxu0 0.0
        %381 = vmatpush1.msra.mxu0 %v351
        %382 = vmatprep.subr.mxu0 0.0
        %383 = vmatpush1.msra.mxu0 %v352
        %384 = vmatprep.subr.mxu0 0.0
        %385 = vmatpush1.msra.mxu0 %v353
        %386 = vmatprep.subr.mxu0 0.0
        %387 = vmatpush1.msra.mxu0 %v354
        %388 = vmatprep.subr.mxu0 0.0
        %389 = vmatpush1.msra.mxu0 %v355
        %390 = vmatprep.subr.mxu0 0.0
        %391 = vmatpush1.msra.mxu0 %v356
        %392 = vmatprep.subr.mxu0 0.0
        %393 = vmatpush1.msra.mxu0 %v357
        %394 = vmatprep.subr.mxu0 0.0
        %395 = vmatpush1.msra.mxu0 0.0
        %396 = vmatprep.subr.mxu0 0.0
        %397 = vmatpush1.msra.mxu0 0.0
        %398 = vmatprep.subr.mxu0 0.0
        %399 = vmatpush1.msra.mxu0 0.0
        %400 = vmatprep.subr.mxu0 0.0
        %401 = vmatpush1.msra.mxu0 0.0
        %402 = vmatprep.subr.mxu0 0.0
        %403 = vmatpush1.msra.mxu0 0.0
        %404 = vmatprep.subr.mxu0 0.0
        %405 = vmatpush1.msra.mxu0 0.0
        %406 = vmatprep.subr.mxu0 0.0
        %407 = vmatpush1.msra.mxu0 0.0
        %408 = vmatprep.subr.mxu0 0.0
        %409 = vmatpush1.msra.mxu0 0.0
        %410 = vmatprep.subr.mxu0 0.0
        %411 = vmatpush1.msra.mxu0 0.0
        %412 = vmatprep.subr.mxu0 0.0
        %413 = vmatpush1.msra.mxu0 0.0
        %414 = vmatprep.subr.mxu0 0.0
        %415 = vmatpush1.msra.mxu0 0.0
        %416 = vmatprep.subr.mxu0 0.0
        %417 = vmatpush1.msra.mxu0 0.0
        %418 = vmatprep.subr.mxu0 0.0
        %419 = vmatpush1.msra.mxu0 0.0
        %420 = vmatprep.subr.mxu0 0.0
        %421 = vmatpush1.msra.mxu0 0.0
        %422 = vmatprep.subr.mxu0 0.0
        %423 = vmatpush1.msra.mxu0 0.0
        %424 = vmatprep.subr.mxu0 0.0
        %425 = vmatpush1.msra.mxu0 0.0
        %426 = vmatprep.mubr.f32.mxu0 0.0
        %427 = vmatmul.mubr.f32.gmra.mrb[0].mxu0 %v341
        %v428 = vpop.f32.mrb[0].mxu0
        %v429 = vadd.f32 %v361, %v428
        %v430 = vpop.f32.mrb[0].mxu0
        %431 = vdwg.mxu0
        %v432 = vadd.f32 %v242, %v429
        %433 = vadd.xlane.f32.xlu0 %v432
        %v434 = vpop.xlane.xlu0 %433
        %v435 = vmul.f32 %v434, 0.03125
        %v436 = vsub.f32 %v432, %v435
        %v437 = vmul.f32 %v436, %v436
        %438 = vadd.xlane.f32.xlu0 %v437
        %v439 = vpop.xlane.xlu0 %438
        %v440 = vmul.f32 %v435, %v435
        %v441 = vmul.f32 %v440, 96.0
        %v442 = vsub.f32 %v439, %v441
        %v443 = vmul.f32 %v442, 0.03125
        %v444 = vadd.f32 %v443, 1e-05
        %v445 = vrsqrt.pop %v444
        %v446 = vmul.f32 %v436, %v445
        %v447 = vlaneseq
        %v448 = vshrl.u32 %v447, 7
        %v449 = vsub.s32 0, %v448
        %v450 = vrot.slane %v245, %v449
        %v451 = vmul.f32 %v446, %v450
        %v452 = vlaneseq
        %v453 = vshrl.u32 %v452, 7
        %v454 = vsub.s32 0, %v453
        %v455 = vrot.slane %v246, %v454
        %v456 = vadd.f32 %v451, %v455
        %457 = vst [vmem:[%s241] sm:$0xff] %v456
        %s458 = sand.u32 %s119, 1
        %s459 = scalar_lea.sflag [#allocation4], %s458
        %s460 = sand.u32 %s119, 1
        %s461 = smul.addr %s460, 8
        %s462 = scalar_lea.vmem [#allocation8], %s461
        // Predicated region
        $region49: #{tpu_custom_call.1} parent=35 // pred_check
          %p463 = pneg %p129
        $region50: #{tpu_custom_call.1} parent=35 // pred_check_branch
          %465 = sbr.rel (%p463) target = $region52
        $region51: #{tpu_custom_call.1} parent=35 // pred_region
          %s467 = ssub.s32 128, 128
          %468 = vsyncadd %s459, %s467
          %s469 = smul.addr %s22, 128
          %s470 = scalar_lea.hbm %s4, %s469
          %s472 = sshll.u32 %s462, 4
          %s473 = int_to_ptr.vmem [resolvable:$true] %s472
          %475 = dma.vmem_to_hbm [thread:$0]  %s473, 128, %s470, %s459
        $region52: #{tpu_custom_call.1} parent=35 // pred_fallthru
          _
      $region36: #{tpu_custom_call.1} parent=5 // pred_fallthru
        _
      %p476 = scmp.le.s32.totalorder 2, %s17
      // Predicated region
      $region53: #{tpu_custom_call.1} parent=5 // pred_check
        %p477 = pneg %p476
      $region54: #{tpu_custom_call.1} parent=5 // pred_check_branch
        %479 = sbr.rel (%p477) target = $region56
      $region55: #{tpu_custom_call.1} parent=5 // pred_region
        %s480 = ssub.s32 %s17, 2
        // Predicated region
        $region57: #{tpu_custom_call.1} parent=55 // pred_check
          %p481 = pneg %p135
        $region58: #{tpu_custom_call.1} parent=55 // pred_check_branch
          %483 = sbr.rel (%p481) target = $region60
        $region59: #{tpu_custom_call.1} parent=55 // pred_region
          %s484 = sand.u32 %s120, 1
          %s485 = scalar_lea.sflag [#allocation4], %s484
          %s486 = sand.u32 %s120, 1
          %s487 = smul.addr %s486, 8
          %s488 = scalar_lea.vmem [#allocation8], %s487
          %489 = dma.done %s485, 128
        $region60: #{tpu_custom_call.1} parent=55 // pred_fallthru
          _
      $region56: #{tpu_custom_call.1} parent=5 // pred_fallthru
        _
    $region6: #{tpu_custom_call.1} parent=1 // loop_footer
      %s21 = sadd.s32 1, %s17
    $region7: #{tpu_custom_call.1} parent=1 // loop_footer_branch
      %16 = sbr.rel target = $region3
    $region8: #{tpu_custom_call.1} parent=1 // loop_exit
      _
    %490 = vsyncpa [#allocation3], 1
    %s491 = scalar_lea.sflag [#allocation3], 1
    %492 = vsyncpa %s491, 1
    %493 = vsyncpa [#allocation6], 1
    %494 = vsyncpa [#allocation4], 1
    %s495 = scalar_lea.sflag [#allocation4], 1
    %496 = vsyncpa %s495, 1

</llo_original>
